<compile_context>
chip_gen: v7x
topology: tpu7x:2x2x1
jax: 0.10.0
libtpu: 0.0.40
codegen_flags: <defaults>
</compile_context>

<pallas_src>
import math

import jax
import jax.numpy as jnp
from jax.experimental import pallas as pl
from jax.experimental.pallas import tpu as pltpu

HIDDEN = 16
LANE = 128


def _round_up(x, m):
    return ((x + m - 1) // m) * m


def _choose_tile(batch, tb_max):
    """Lane-aligned batch tile; even step count (>=2) when tiling is needed."""
    if batch <= LANE:
        return LANE
    # At least two grid steps (v7x has two TensorCores) and an even count so
    # they stay balanced; each tile capped at tb_max (VMEM headroom).
    n_steps = max(2, -(-batch // tb_max))
    if n_steps % 2:
        n_steps += 1
    return min(tb_max, _round_up(-(-batch // n_steps), LANE))


# ----------------------------------------------------------------------------
# Kernel: one batch tile of the whole 3-layer MLP, batch on the lane axis.
#   x_ref : (Kp, TB)   concat(state, action)^T, zero-padded fan-in
#   w*    : PyTorch (out_features, in_features) layout, VMEM-resident
#   b*    : (out_features, 1) columns, broadcast across lanes
#   o_ref : (1, TB)    lane-dense q^T slab
# ----------------------------------------------------------------------------
def critic_mlp_kernel(x_ref, w1_ref, b1_ref, w2_ref, b2_ref, w3_ref, b3_ref,
                      o_ref):
    # fc1: (H, Kp) @ (Kp, TB) -> (H, TB)
    h1 = jnp.dot(w1_ref[...], x_ref[...], preferred_element_type=jnp.float32)
    h1 = jnp.maximum(h1 + b1_ref[...], 0.0)
    # fc2: (H, H) @ (H, TB) -> (H, TB)
    h2 = jnp.dot(w2_ref[...], h1, preferred_element_type=jnp.float32)
    h2 = jnp.maximum(h2 + b2_ref[...], 0.0)
    # fc3: (1, H) @ (H, TB) -> (1, TB)  lane-dense output slab
    q = jnp.dot(w3_ref[...], h2, preferred_element_type=jnp.float32)
    o_ref[...] = (q + b3_ref[...]).astype(o_ref.dtype)


def critic_forward(state, action, params, *, tb_max=8192):
    """state: (B, state_dim), action: (B, action_dim) -> (B, 1) f32."""
    state = state.astype(jnp.float32)
    action = action.astype(jnp.float32)
    B, S = state.shape
    A = action.shape[1]
    K = S + A
    w1, b1, w2, b2, w3, b3 = params          # PyTorch (out, in) layout
    Kp = w1.shape[1]                          # fan-in padded to multiple of 8

    TB = _choose_tile(B, tb_max)
    grid_n = -(-B // TB)
    Bp = grid_n * TB

    # Batch-on-lanes input: x^T, zero-padded to (Kp, Bp).  One cheap
    # wrapper-side transpose so all in-kernel work is lane-dense.
    xt = jnp.concatenate([state, action], axis=1).T
    xt = jnp.pad(xt, ((0, Kp - K), (0, Bp - B)))

    resident = lambda a: pl.BlockSpec(a.shape, lambda i: (0, 0))
    # TODO(synk): resident weight specs could use pipeline_mode=pl.Buffered(1)
    # to skip double-buffering; negligible here (a few KiB of weights).

    flops = 2 * Bp * (Kp * HIDDEN + HIDDEN * HIDDEN + HIDDEN)
    weight_bytes = 4 * sum(int(p.size) for p in params)
    bytes_accessed = 4 * (Kp * Bp + Bp) + weight_bytes

    out = pl.pallas_call(
        critic_mlp_kernel,
        out_shape=jax.ShapeDtypeStruct((1, Bp), jnp.float32),
        grid=(grid_n,),
        in_specs=[
            pl.BlockSpec((Kp, TB), lambda i: (0, i)),   # x^T batch tile
            resident(w1), resident(b1),
            resident(w2), resident(b2),
            resident(w3), resident(b3),
        ],
        out_specs=pl.BlockSpec((1, TB), lambda i: (0, i)),
        compiler_params=pltpu.CompilerParams(
            dimension_semantics=("parallel",),
            # 48 MiB: above v5e/v6e scoped defaults (16/32 MiB), below v7x's
            # 64 MiB physical VMEM; actual usage at TB=8192 is only a few MiB.
            vmem_limit_bytes=48 * 1024 * 1024,
        ),
        cost_estimate=pl.CostEstimate(
            flops=flops, transcendentals=0, bytes_accessed=bytes_accessed),
    )(xt, w1, b1, w2, b2, w3, b3)

    # (1, Bp) -> (B, 1); same row-major element order, so this is free.
    return out[0, :B].reshape(B, 1)


# ----------------------------------------------------------------------------
# Deterministic parameter init matching nn.Linear's default:
#   U(-1/sqrt(fan_in), 1/sqrt(fan_in)) for both weight and bias.
# Weights are stored in PyTorch's (out_features, in_features) layout (exactly
# what the batch-on-lanes kernel consumes); fc1's fan-in is zero-padded to a
# multiple of 8 sublanes so the kernel sees an aligned contraction dim.
# ----------------------------------------------------------------------------
def init_critic_params(key, state_dim, action_dim):
    def linear(key, fan_in, fan_out):
        kw, kb = jax.random.split(key)
        bound = 1.0 / math.sqrt(fan_in)
        w = jax.random.uniform(kw, (fan_out, fan_in), jnp.float32,
                               minval=-bound, maxval=bound)
        b = jax.random.uniform(kb, (fan_out, 1), jnp.float32,
                               minval=-bound, maxval=bound)
        return w, b

    k1, k2, k3 = jax.random.split(key, 3)
    K = state_dim + action_dim
    Kp = _round_up(K, 8)
    w1, b1 = linear(k1, K, HIDDEN)
    w1 = jnp.pad(w1, ((0, 0), (0, Kp - K)))   # zero fan-in padding (no effect)
    w2, b2 = linear(k2, HIDDEN, HIDDEN)
    w3, b3 = linear(k3, HIDDEN, 1)
    return (w1, b1, w2, b2, w3, b3)


def _reference(state, action, params):
    """Pure-JAX reference replicating the PyTorch module (y = x @ W^T + b)."""
    w1, b1, w2, b2, w3, b3 = params
    x = jnp.concatenate([state, action], axis=1)
    K = x.shape[1]
    h = jnp.maximum(x @ w1[:, :K].T + b1[:, 0], 0.0)
    h = jnp.maximum(h @ w2.T + b2[:, 0], 0.0)
    return h @ w3.T + b3[:, 0]


if __name__ == "__main__":
    state_dim, action_dim = 8, 4

    key = jax.random.PRNGKey(0)
    k_params, k_s1, k_a1, k_s2, k_a2 = jax.random.split(key, 5)
    params = init_critic_params(k_params, state_dim, action_dim)

    # Small batch (single 128-lane tile, batch padded 4 -> 128).
    state = jax.random.normal(k_s1, (4, state_dim), jnp.float32)
    action = jax.random.normal(k_a1, (4, action_dim), jnp.float32)
    q = jax.block_until_ready(critic_forward(state, action, params))
    q_ref = _reference(state, action, params)
    assert q.shape == (4, 1)
    assert jnp.allclose(q, q_ref, atol=1e-5, rtol=1e-5)

    # Larger, non-aligned batch: exercises lane padding + a 2-step grid
    # (B=1200 -> TB=640, Bp=1280, grid=(2,)) so both v7x TensorCores get work.
    state2 = jax.random.normal(k_s2, (1200, state_dim), jnp.float32)
    action2 = jax.random.normal(k_a2, (1200, action_dim), jnp.float32)
    q2 = jax.block_until_ready(critic_forward(state2, action2, params))
    q2_ref = _reference(state2, action2, params)
    assert q2.shape == (1200, 1)
    assert jnp.allclose(q2, q2_ref, atol=1e-5, rtol=1e-5)

    print("KERNEL_OK")
</pallas_src>

<mosaic_0001>
module attributes {stable_mosaic.version = 11 : i64} {
  func.func @critic_mlp_kernel(%arg0: i32, %arg1: memref<16x128xf32, #tpu.memory_space<vmem>>, %arg2: memref<16x16xf32, #tpu.memory_space<vmem>>, %arg3: memref<16x1xf32, #tpu.memory_space<vmem>>, %arg4: memref<16x16xf32, #tpu.memory_space<vmem>>, %arg5: memref<16x1xf32, #tpu.memory_space<vmem>>, %arg6: memref<1x16xf32, #tpu.memory_space<vmem>>, %arg7: memref<1x1xf32, #tpu.memory_space<vmem>>, %arg8: memref<1x128xf32, #tpu.memory_space<vmem>>) attributes {dimension_semantics = [#tpu.dimension_semantics<parallel>], iteration_bounds = array<i64: 1>, scalar_prefetch = 0 : i64, scratch_operands = 0 : i64, tpu.core_type = #tpu.core_type<tc>, window_params = [{transform_indices = @transform_0, window_bounds = array<i64: 16, 128>}, {pipeline_mode = #tpu.pipeline_mode<synchronous>, transform_indices = @transform_1, window_bounds = array<i64: 16, 16>}, {pipeline_mode = #tpu.pipeline_mode<synchronous>, transform_indices = @transform_2, window_bounds = array<i64: 16, 1>}, {pipeline_mode = #tpu.pipeline_mode<synchronous>, transform_indices = @transform_3, window_bounds = array<i64: 16, 16>}, {pipeline_mode = #tpu.pipeline_mode<synchronous>, transform_indices = @transform_4, window_bounds = array<i64: 16, 1>}, {pipeline_mode = #tpu.pipeline_mode<synchronous>, transform_indices = @transform_5, window_bounds = array<i64: 1, 16>}, {pipeline_mode = #tpu.pipeline_mode<synchronous>, transform_indices = @transform_6, window_bounds = array<i64: 1, 1>}, {transform_indices = @transform_7, window_bounds = array<i64: 1, 128>}]} {
    %c0 = arith.constant 0 : index
    %c0_0 = arith.constant 0 : index
    %0 = vector.load %arg2[%c0, %c0_0] : memref<16x16xf32, #tpu.memory_space<vmem>>, vector<16x16xf32>
    %c0_1 = arith.constant 0 : index
    %c0_2 = arith.constant 0 : index
    %1 = vector.load %arg1[%c0_1, %c0_2] : memref<16x128xf32, #tpu.memory_space<vmem>>, vector<16x128xf32>
    %cst = arith.constant dense<0.000000e+00> : vector<16x128xf32>
    %2 = tpu.matmul %0, %1, %cst {dimension_numbers = #tpu.dot_dimension_numbers<[1], [0], [0], [1], [0, 0, 1, 1], [], []>} : vector<16x16xf32>, vector<16x128xf32>, vector<16x128xf32> -> vector<16x128xf32>
    %c0_3 = arith.constant 0 : index
    %c0_4 = arith.constant 0 : index
    %3 = vector.load %arg3[%c0_3, %c0_4] : memref<16x1xf32, #tpu.memory_space<vmem>>, vector<16x1xf32>
    %4 = vector.broadcast %3 : vector<16x1xf32> to vector<16x128xf32>
    %5 = arith.addf %2, %4 : vector<16x128xf32>
    %cst_5 = arith.constant 0.000000e+00 : f32
    %6 = vector.broadcast %cst_5 : f32 to vector<16x128xf32>
    %7 = arith.maximumf %5, %6 : vector<16x128xf32>
    %c0_6 = arith.constant 0 : index
    %c0_7 = arith.constant 0 : index
    %8 = vector.load %arg4[%c0_6, %c0_7] : memref<16x16xf32, #tpu.memory_space<vmem>>, vector<16x16xf32>
    %cst_8 = arith.constant dense<0.000000e+00> : vector<16x128xf32>
    %9 = tpu.matmul %8, %7, %cst_8 {dimension_numbers = #tpu.dot_dimension_numbers<[1], [0], [0], [1], [0, 0, 1, 1], [], []>} : vector<16x16xf32>, vector<16x128xf32>, vector<16x128xf32> -> vector<16x128xf32>
    %c0_9 = arith.constant 0 : index
    %c0_10 = arith.constant 0 : index
    %10 = vector.load %arg5[%c0_9, %c0_10] : memref<16x1xf32, #tpu.memory_space<vmem>>, vector<16x1xf32>
    %11 = vector.broadcast %10 : vector<16x1xf32> to vector<16x128xf32>
    %12 = arith.addf %9, %11 : vector<16x128xf32>
    %cst_11 = arith.constant 0.000000e+00 : f32
    %13 = vector.broadcast %cst_11 : f32 to vector<16x128xf32>
    %14 = arith.maximumf %12, %13 : vector<16x128xf32>
    %c0_12 = arith.constant 0 : index
    %c0_13 = arith.constant 0 : index
    %15 = vector.load %arg6[%c0_12, %c0_13] : memref<1x16xf32, #tpu.memory_space<vmem>>, vector<1x16xf32>
    %cst_14 = arith.constant dense<0.000000e+00> : vector<1x128xf32>
    %16 = tpu.matmul %15, %14, %cst_14 {dimension_numbers = #tpu.dot_dimension_numbers<[1], [0], [0], [1], [0, 0, 1, 1], [], []>} : vector<1x16xf32>, vector<16x128xf32>, vector<1x128xf32> -> vector<1x128xf32>
    %c0_15 = arith.constant 0 : index
    %c0_16 = arith.constant 0 : index
    %17 = vector.load %arg7[%c0_15, %c0_16] : memref<1x1xf32, #tpu.memory_space<vmem>>, vector<1x1xf32>
    %18 = vector.broadcast %17 : vector<1x1xf32> to vector<1x128xf32>
    %19 = arith.addf %16, %18 : vector<1x128xf32>
    %c0_17 = arith.constant 0 : index
    %c0_18 = arith.constant 0 : index
    %20 = vector.load %arg8[%c0_17, %c0_18] : memref<1x128xf32, #tpu.memory_space<vmem>>, vector<1x128xf32>
    tpu.vector_store %arg8[%c0_17, %c0_18], %19 {strides = array<i32>} : memref<1x128xf32, #tpu.memory_space<vmem>>, vector<1x128xf32>,
    return
  }
  func.func @transform_0(%arg0: i32) -> (i32, i32) {
    %c0_i32 = arith.constant 0 : i32
    %c0_i32_0 = arith.constant 0 : i32
    return %c0_i32, %arg0 : i32, i32
  }
  func.func @transform_1(%arg0: i32) -> (i32, i32) {
    %c0_i32 = arith.constant 0 : i32
    %c0_i32_0 = arith.constant 0 : i32
    %c0_i32_1 = arith.constant 0 : i32
    return %c0_i32, %c0_i32_0 : i32, i32
  }
  func.func @transform_2(%arg0: i32) -> (i32, i32) {
    %c0_i32 = arith.constant 0 : i32
    %c0_i32_0 = arith.constant 0 : i32
    %c0_i32_1 = arith.constant 0 : i32
    return %c0_i32, %c0_i32_0 : i32, i32
  }
  func.func @transform_3(%arg0: i32) -> (i32, i32) {
    %c0_i32 = arith.constant 0 : i32
    %c0_i32_0 = arith.constant 0 : i32
    %c0_i32_1 = arith.constant 0 : i32
    return %c0_i32, %c0_i32_0 : i32, i32
  }
  func.func @transform_4(%arg0: i32) -> (i32, i32) {
    %c0_i32 = arith.constant 0 : i32
    %c0_i32_0 = arith.constant 0 : i32
    %c0_i32_1 = arith.constant 0 : i32
    return %c0_i32, %c0_i32_0 : i32, i32
  }
  func.func @transform_5(%arg0: i32) -> (i32, i32) {
    %c0_i32 = arith.constant 0 : i32
    %c0_i32_0 = arith.constant 0 : i32
    %c0_i32_1 = arith.constant 0 : i32
    return %c0_i32, %c0_i32_0 : i32, i32
  }
  func.func @transform_6(%arg0: i32) -> (i32, i32) {
    %c0_i32 = arith.constant 0 : i32
    %c0_i32_0 = arith.constant 0 : i32
    %c0_i32_1 = arith.constant 0 : i32
    return %c0_i32, %c0_i32_0 : i32, i32
  }
  func.func @transform_7(%arg0: i32) -> (i32, i32) {
    %c0_i32 = arith.constant 0 : i32
    %c0_i32_0 = arith.constant 0 : i32
    return %c0_i32, %arg0 : i32, i32
  }
}

</mosaic_0001>

<llo_original>
// kernel: tpu_custom_call.1
$region0: #{tpu_custom_call.1}
  #allocation0 [shape = 'u32[]', space=smem, size = 0x4, offset = 0x4, fixed_abs, tag = 'smem constant byte address 0x4 - core index']
  #allocation1 [shape = 'u32[144,128]{1,0:T(1,128)}', space=vmem, size = 0x12000, scoped, tag = 'internal scratch']
  #allocation2 [shape = 'f32[1,1]{1,0:T(1,128)S(1)}', space=vmem, size = 0x200, scoped, tag = 'scoped memory for tpu_custom_call.1']
  %s0 = inlined_call_operand.vmem [shape: f32[16,128], index: 0, kind: input, shape index: {}]
  %s1 = inlined_call_operand.vmem [shape: f32[16,16], index: 1, kind: input, shape index: {}]
  %s2 = inlined_call_operand.vmem [shape: f32[16,1], index: 2, kind: input, shape index: {}]
  %s3 = inlined_call_operand.vmem [shape: f32[16,16], index: 3, kind: input, shape index: {}]
  %s4 = inlined_call_operand.vmem [shape: f32[16,1], index: 4, kind: input, shape index: {}]
  %s5 = inlined_call_operand.vmem [shape: f32[1,16], index: 5, kind: input, shape index: {}]
  %s6 = inlined_call_operand.<no memory space> [shape: f32[1,1], index: 6, kind: input, shape index: {}]
  %s7 = inlined_call_operand.hbm [shape: f32[1,128], index: 7, kind: output, shape index: {}]
  %s8 = sld [smem:[#allocation0]]
  $region38: #{tpu_custom_call.1} parent=0
    _
  %s10 = ssub.s32 1, %s8
  %s11 = scalar_select 0, %s10, %s8
  %v12 = vstv %s6
  %13 = vst [vmem:[#allocation2] sm:$0x1] %v12
  $region1: #{tpu_custom_call.1} parent=0
    #allocation3 [shape = 'u8[512]{0}', space=vmem, size = 0x400, scoped, tag = 'output window, operand 0, single buffered']
    #allocation4 [shape = 's32[1]{0}', space=sflag, size = 0x4, scoped, tag = 'scoped memory for tpu_custom_call.1']
    %14 = vsyncpa [#allocation4], 0
    // Predicated region
    $region2: #{tpu_custom_call.1} parent=1 // pred_check
      _
    $region3: #{tpu_custom_call.1} parent=1 // pred_check_branch
      %16 = sbr.rel (0) target = $region5
    $region4: #{tpu_custom_call.1} parent=1 // pred_region
      _
    $region5: #{tpu_custom_call.1} parent=1 // pred_fallthru
      _
    // Predicated region
    $region6: #{tpu_custom_call.1} parent=1 // pred_check
      _
    $region7: #{tpu_custom_call.1} parent=1 // pred_check_branch
      %18 = sbr.rel (0) target = $region9
    $region8: #{tpu_custom_call.1} parent=1 // pred_region
      _
    $region9: #{tpu_custom_call.1} parent=1 // pred_fallthru
      _
    // Predicated region
    $region10: #{tpu_custom_call.1} parent=1 // pred_check
      _
    $region11: #{tpu_custom_call.1} parent=1 // pred_check_branch
      %20 = sbr.rel (0) target = $region13
    $region12: #{tpu_custom_call.1} parent=1 // pred_region
      _
    $region13: #{tpu_custom_call.1} parent=1 // pred_fallthru
      _
    // Predicated region
    $region14: #{tpu_custom_call.1} parent=1 // pred_check
      _
    $region15: #{tpu_custom_call.1} parent=1 // pred_check_branch
      %22 = sbr.rel (0) target = $region17
    $region16: #{tpu_custom_call.1} parent=1 // pred_region
      _
    $region17: #{tpu_custom_call.1} parent=1 // pred_fallthru
      _
    // Predicated region
    $region18: #{tpu_custom_call.1} parent=1 // pred_check
      _
    $region19: #{tpu_custom_call.1} parent=1 // pred_check_branch
      %24 = sbr.rel (0) target = $region21
    $region20: #{tpu_custom_call.1} parent=1 // pred_region
      _
    $region21: #{tpu_custom_call.1} parent=1 // pred_fallthru
      _
    // Predicated region
    $region22: #{tpu_custom_call.1} parent=1 // pred_check
      _
    $region23: #{tpu_custom_call.1} parent=1 // pred_check_branch
      %26 = sbr.rel (0) target = $region25
    $region24: #{tpu_custom_call.1} parent=1 // pred_region
      _
    $region25: #{tpu_custom_call.1} parent=1 // pred_fallthru
      _
    // Predicated region
    $region26: #{tpu_custom_call.1} parent=1 // pred_check
      _
    $region27: #{tpu_custom_call.1} parent=1 // pred_check_branch
      %28 = sbr.rel (0) target = $region29
    $region28: #{tpu_custom_call.1} parent=1 // pred_region
      _
    $region29: #{tpu_custom_call.1} parent=1 // pred_fallthru
      _
    %v29 = vld [vmem:[%s1] sm:$0xff]
    %v30 = vld [vmem:[%s1 + $0x8] sm:$0xff]
    %v31 = vld [vmem:[%s0] sm:$0xff]
    %v32 = vld [vmem:[%s0 + $0x8] sm:$0xff]
    %v33 = vld [vmem:[%s2] sm:$0xff]
    %v34 = vld [vmem:[%s2 + $0x8] sm:$0xff]
    %36 = vset.pattern.permute.xlu0 0
    %37 = vperm.xlu0 %36, %v33
    %v38 = vpop.permute.xlu0 %37
    %41 = vset.pattern.permute.xlu0 0
    %42 = vperm.xlu0 %41, %v34
    %v43 = vpop.permute.xlu0 %42
    %vm45 = vcmask 130048
    %v47 = vsel %vm45, %v29, 0
    %v50 = vsel %vm45, %v30, 0
    %52 = vmatprep.subr.mxu0 0.0
    %53 = vmatpush1.msra.mxu0 %v31
    %54 = vmatprep.subr.mxu0 0.0
    %55 = vmatpush1.msra.mxu0 %v32
    %56 = vmatprep.subr.mxu0 0.0
    %57 = vmatpush1.msra.mxu0 0.0
    %58 = vmatprep.subr.mxu0 0.0
    %59 = vmatpush1.msra.mxu0 0.0
    %60 = vmatprep.subr.mxu0 0.0
    %61 = vmatpush1.msra.mxu0 0.0
    %62 = vmatprep.subr.mxu0 0.0
    %63 = vmatpush1.msra.mxu0 0.0
    %64 = vmatprep.subr.mxu0 0.0
    %65 = vmatpush1.msra.mxu0 0.0
    %66 = vmatprep.subr.mxu0 0.0
    %67 = vmatpush1.msra.mxu0 0.0
    %68 = vmatprep.subr.mxu0 0.0
    %69 = vmatpush1.msra.mxu0 0.0
    %70 = vmatprep.subr.mxu0 0.0
    %71 = vmatpush1.msra.mxu0 0.0
    %72 = vmatprep.subr.mxu0 0.0
    %73 = vmatpush1.msra.mxu0 0.0
    %74 = vmatprep.subr.mxu0 0.0
    %75 = vmatpush1.msra.mxu0 0.0
    %76 = vmatprep.subr.mxu0 0.0
    %77 = vmatpush1.msra.mxu0 0.0
    %78 = vmatprep.subr.mxu0 0.0
    %79 = vmatpush1.msra.mxu0 0.0
    %80 = vmatprep.subr.mxu0 0.0
    %81 = vmatpush1.msra.mxu0 0.0
    %82 = vmatprep.subr.mxu0 0.0
    %83 = vmatpush1.msra.mxu0 0.0
    %84 = vmatprep.subr.mxu0 0.0
    %85 = vmatpush1.msra.mxu0 0.0
    %86 = vmatprep.subr.mxu0 0.0
    %87 = vmatpush1.msra.mxu0 0.0
    %88 = vmatprep.subr.mxu0 0.0
    %89 = vmatpush1.msra.mxu0 0.0
    %90 = vmatprep.subr.mxu0 0.0
    %91 = vmatpush1.msra.mxu0 0.0
    %92 = vmatprep.subr.mxu0 0.0
    %93 = vmatpush1.msra.mxu0 0.0
    %94 = vmatprep.subr.mxu0 0.0
    %95 = vmatpush1.msra.mxu0 0.0
    %96 = vmatprep.subr.mxu0 0.0
    %97 = vmatpush1.msra.mxu0 0.0
    %98 = vmatprep.subr.mxu0 0.0
    %99 = vmatpush1.msra.mxu0 0.0
    %100 = vmatprep.subr.mxu0 0.0
    %101 = vmatpush1.msra.mxu0 0.0
    %102 = vmatprep.subr.mxu0 0.0
    %103 = vmatpush1.msra.mxu0 0.0
    %104 = vmatprep.subr.mxu0 0.0
    %105 = vmatpush1.msra.mxu0 0.0
    %106 = vmatprep.subr.mxu0 0.0
    %107 = vmatpush1.msra.mxu0 0.0
    %108 = vmatprep.subr.mxu0 0.0
    %109 = vmatpush1.msra.mxu0 0.0
    %110 = vmatprep.subr.mxu0 0.0
    %111 = vmatpush1.msra.mxu0 0.0
    %112 = vmatprep.subr.mxu0 0.0
    %113 = vmatpush1.msra.mxu0 0.0
    %114 = vmatprep.subr.mxu0 0.0
    %115 = vmatpush1.msra.mxu0 0.0
    %116 = vmatprep.mubr.f32.mxu0 0.0
    %117 = vmatmul.mubr.f32.gmra.mrb[0].mxu0 %v47
    %v118 = vpop.f32.mrb[0].mxu0
    %v119 = vadd.f32 %v38, %v118
    %v120 = vpop.f32.mrb[0].mxu0
    %121 = vmatprep.mubr.f32.mxu0 0.0
    %122 = vmatmul.mubr.f32.gmra.mrb[0].mxu0 %v50
    %v123 = vpop.f32.mrb[0].mxu0
    %v124 = vadd.f32 %v43, %v123
    %v125 = vpop.f32.mrb[0].mxu0
    %126 = vdwg.mxu0
    %v127 = vmax.f32 %v119, 0.0
    %v128 = vmax.f32 %v124, 0.0
    %v129 = vld [vmem:[%s3] sm:$0xff]
    %v130 = vld [vmem:[%s3 + $0x8] sm:$0xff]
    %v131 = vld [vmem:[%s4] sm:$0xff]
    %v132 = vld [vmem:[%s4 + $0x8] sm:$0xff]
    %134 = vset.pattern.permute.xlu0 0
    %135 = vperm.xlu0 %134, %v131
    %v136 = vpop.permute.xlu0 %135
    %139 = vset.pattern.permute.xlu0 0
    %140 = vperm.xlu0 %139, %v132
    %v141 = vpop.permute.xlu0 %140
    %v144 = vsel %vm45, %v129, 0
    %v147 = vsel %vm45, %v130, 0
    %149 = vmatprep.subr.mxu0 0.0
    %150 = vmatpush1.msra.mxu0 %v127
    %151 = vmatprep.subr.mxu0 0.0
    %152 = vmatpush1.msra.mxu0 %v128
    %153 = vmatprep.subr.mxu0 0.0
    %154 = vmatpush1.msra.mxu0 0.0
    %155 = vmatprep.subr.mxu0 0.0
    %156 = vmatpush1.msra.mxu0 0.0
    %157 = vmatprep.subr.mxu0 0.0
    %158 = vmatpush1.msra.mxu0 0.0
    %159 = vmatprep.subr.mxu0 0.0
    %160 = vmatpush1.msra.mxu0 0.0
    %161 = vmatprep.subr.mxu0 0.0
    %162 = vmatpush1.msra.mxu0 0.0
    %163 = vmatprep.subr.mxu0 0.0
    %164 = vmatpush1.msra.mxu0 0.0
    %165 = vmatprep.subr.mxu0 0.0
    %166 = vmatpush1.msra.mxu0 0.0
    %167 = vmatprep.subr.mxu0 0.0
    %168 = vmatpush1.msra.mxu0 0.0
    %169 = vmatprep.subr.mxu0 0.0
    %170 = vmatpush1.msra.mxu0 0.0
    %171 = vmatprep.subr.mxu0 0.0
    %172 = vmatpush1.msra.mxu0 0.0
    %173 = vmatprep.subr.mxu0 0.0
    %174 = vmatpush1.msra.mxu0 0.0
    %175 = vmatprep.subr.mxu0 0.0
    %176 = vmatpush1.msra.mxu0 0.0
    %177 = vmatprep.subr.mxu0 0.0
    %178 = vmatpush1.msra.mxu0 0.0
    %179 = vmatprep.subr.mxu0 0.0
    %180 = vmatpush1.msra.mxu0 0.0
    %181 = vmatprep.subr.mxu0 0.0
    %182 = vmatpush1.msra.mxu0 0.0
    %183 = vmatprep.subr.mxu0 0.0
    %184 = vmatpush1.msra.mxu0 0.0
    %185 = vmatprep.subr.mxu0 0.0
    %186 = vmatpush1.msra.mxu0 0.0
    %187 = vmatprep.subr.mxu0 0.0
    %188 = vmatpush1.msra.mxu0 0.0
    %189 = vmatprep.subr.mxu0 0.0
    %190 = vmatpush1.msra.mxu0 0.0
    %191 = vmatprep.subr.mxu0 0.0
    %192 = vmatpush1.msra.mxu0 0.0
    %193 = vmatprep.subr.mxu0 0.0
    %194 = vmatpush1.msra.mxu0 0.0
    %195 = vmatprep.subr.mxu0 0.0
    %196 = vmatpush1.msra.mxu0 0.0
    %197 = vmatprep.subr.mxu0 0.0
    %198 = vmatpush1.msra.mxu0 0.0
    %199 = vmatprep.subr.mxu0 0.0
    %200 = vmatpush1.msra.mxu0 0.0
    %201 = vmatprep.subr.mxu0 0.0
    %202 = vmatpush1.msra.mxu0 0.0
    %203 = vmatprep.subr.mxu0 0.0
    %204 = vmatpush1.msra.mxu0 0.0
    %205 = vmatprep.subr.mxu0 0.0
    %206 = vmatpush1.msra.mxu0 0.0
    %207 = vmatprep.subr.mxu0 0.0
    %208 = vmatpush1.msra.mxu0 0.0
    %209 = vmatprep.subr.mxu0 0.0
    %210 = vmatpush1.msra.mxu0 0.0
    %211 = vmatprep.subr.mxu0 0.0
    %212 = vmatpush1.msra.mxu0 0.0
    %213 = vmatprep.mubr.f32.mxu0 0.0
    %214 = vmatmul.mubr.f32.gmra.mrb[0].mxu0 %v144
    %v215 = vpop.f32.mrb[0].mxu0
    %v216 = vadd.f32 %v136, %v215
    %v217 = vpop.f32.mrb[0].mxu0
    %218 = vmatprep.mubr.f32.mxu0 0.0
    %219 = vmatmul.mubr.f32.gmra.mrb[0].mxu0 %v147
    %v220 = vpop.f32.mrb[0].mxu0
    %v221 = vadd.f32 %v141, %v220
    %v222 = vpop.f32.mrb[0].mxu0
    %223 = vdwg.mxu0
    %v224 = vmax.f32 %v216, 0.0
    %v225 = vmax.f32 %v221, 0.0
    %v226 = vld [vmem:[%s5] sm:$0x1]
    %v227 = vld [vmem:[#allocation2] sm:$0x1]
    %229 = vset.pattern.permute.xlu0 0
    %230 = vperm.xlu0 %229, %v227
    %v231 = vpop.permute.xlu0 %230
    %v233 = vlaneseq
    %v234 = vshrl.u32 %v233, 7
    %v235 = vsub.s32 0, %v234
    %v236 = vrot.slane %v231, %v235
    %v238 = vsel %vm45, %v226, 0
    %240 = vmatprep.subr.mxu0 0.0
    %241 = vmatpush1.msra.mxu0 %v224
    %242 = vmatprep.subr.mxu0 0.0
    %243 = vmatpush1.msra.mxu0 %v225
    %244 = vmatprep.subr.mxu0 0.0
    %245 = vmatpush1.msra.mxu0 0.0
    %246 = vmatprep.subr.mxu0 0.0
    %247 = vmatpush1.msra.mxu0 0.0
    %248 = vmatprep.subr.mxu0 0.0
    %249 = vmatpush1.msra.mxu0 0.0
    %250 = vmatprep.subr.mxu0 0.0
    %251 = vmatpush1.msra.mxu0 0.0
    %252 = vmatprep.subr.mxu0 0.0
    %253 = vmatpush1.msra.mxu0 0.0
    %254 = vmatprep.subr.mxu0 0.0
    %255 = vmatpush1.msra.mxu0 0.0
    %256 = vmatprep.subr.mxu0 0.0
    %257 = vmatpush1.msra.mxu0 0.0
    %258 = vmatprep.subr.mxu0 0.0
    %259 = vmatpush1.msra.mxu0 0.0
    %260 = vmatprep.subr.mxu0 0.0
    %261 = vmatpush1.msra.mxu0 0.0
    %262 = vmatprep.subr.mxu0 0.0
    %263 = vmatpush1.msra.mxu0 0.0
    %264 = vmatprep.subr.mxu0 0.0
    %265 = vmatpush1.msra.mxu0 0.0
    %266 = vmatprep.subr.mxu0 0.0
    %267 = vmatpush1.msra.mxu0 0.0
    %268 = vmatprep.subr.mxu0 0.0
    %269 = vmatpush1.msra.mxu0 0.0
    %270 = vmatprep.subr.mxu0 0.0
    %271 = vmatpush1.msra.mxu0 0.0
    %272 = vmatprep.subr.mxu0 0.0
    %273 = vmatpush1.msra.mxu0 0.0
    %274 = vmatprep.subr.mxu0 0.0
    %275 = vmatpush1.msra.mxu0 0.0
    %276 = vmatprep.subr.mxu0 0.0
    %277 = vmatpush1.msra.mxu0 0.0
    %278 = vmatprep.subr.mxu0 0.0
    %279 = vmatpush1.msra.mxu0 0.0
    %280 = vmatprep.subr.mxu0 0.0
    %281 = vmatpush1.msra.mxu0 0.0
    %282 = vmatprep.subr.mxu0 0.0
    %283 = vmatpush1.msra.mxu0 0.0
    %284 = vmatprep.subr.mxu0 0.0
    %285 = vmatpush1.msra.mxu0 0.0
    %286 = vmatprep.subr.mxu0 0.0
    %287 = vmatpush1.msra.mxu0 0.0
    %288 = vmatprep.subr.mxu0 0.0
    %289 = vmatpush1.msra.mxu0 0.0
    %290 = vmatprep.subr.mxu0 0.0
    %291 = vmatpush1.msra.mxu0 0.0
    %292 = vmatprep.subr.mxu0 0.0
    %293 = vmatpush1.msra.mxu0 0.0
    %294 = vmatprep.subr.mxu0 0.0
    %295 = vmatpush1.msra.mxu0 0.0
    %296 = vmatprep.subr.mxu0 0.0
    %297 = vmatpush1.msra.mxu0 0.0
    %298 = vmatprep.subr.mxu0 0.0
    %299 = vmatpush1.msra.mxu0 0.0
    %300 = vmatprep.subr.mxu0 0.0
    %301 = vmatpush1.msra.mxu0 0.0
    %302 = vmatprep.subr.mxu0 0.0
    %303 = vmatpush1.msra.mxu0 0.0
    %304 = vmatprep.mubr.f32.mxu0 0.0
    %305 = vmatmul.mubr.f32.gmra.mrb[0].mxu0 %v238
    %v306 = vpop.f32.mrb[0].mxu0
    %v307 = vadd.f32 %v236, %v306
    %v308 = vpop.f32.mrb[0].mxu0
    %309 = vdwg.mxu0
    %310 = vst [vmem:[#allocation3] sm:$0x1] %v307
    // Predicated region
    $region30: #{tpu_custom_call.1} parent=1 // pred_check
      _
    $region31: #{tpu_custom_call.1} parent=1 // pred_check_branch
      %312 = sbr.rel (0) target = $region33
    $region32: #{tpu_custom_call.1} parent=1 // pred_region
      %s314 = ssub.s32 16, 16
      %315 = vsyncadd [#allocation4], %s314
      %s317 = sshll.u32 [#allocation3], 4
      %s318 = int_to_ptr.vmem [resolvable:$true] %s317
      %320 = dma.vmem_to_hbm [thread:$0]  %s318, 16, %s7, [#allocation4]
    $region33: #{tpu_custom_call.1} parent=1 // pred_fallthru
      _
    // Predicated region
    $region34: #{tpu_custom_call.1} parent=1 // pred_check
      _
    $region35: #{tpu_custom_call.1} parent=1 // pred_check_branch
      %322 = sbr.rel (0) target = $region37
    $region36: #{tpu_custom_call.1} parent=1 // pred_region
      %323 = dma.done [#allocation4], 16
    $region37: #{tpu_custom_call.1} parent=1 // pred_fallthru
      _
    %324 = vsyncpa [#allocation4], 1

</llo_original>
